<compile_context>
chip_gen: v7x
topology: tpu7x:2x2x1
jax: 0.10.0
libtpu: 0.0.40
codegen_flags: <defaults>
</compile_context>

<pallas_src>
import jax
import jax.numpy as jnp
from jax.experimental import pallas as pl
from jax.experimental.pallas import tpu as pltpu


def _round_up(n, m):
    return ((n + m - 1) // m) * m


def _linear_softmax_kernel(x_ref, wt_ref, b_ref, o_ref):
    # x_ref: (TR, H_in_p)  wt_ref: (H_in_p, H_out_p)  b_ref: (1, H_out_p)
    # o_ref: (TR, H_out_p)
    logits = jnp.dot(x_ref[...], wt_ref[...], preferred_element_type=jnp.float32)
    logits = logits + b_ref[...]          # bias is f32; pad cols hold -1e30
    m = jnp.max(logits, axis=-1, keepdims=True)
    e = jnp.exp(logits - m)
    denom = jnp.sum(e, axis=-1, keepdims=True)
    # Exact divide: approx reciprocal is not accurate enough for rows to sum
    # to 1 within 2e-3; the divide's reciprocal still runs on the EUP slot.
    o_ref[...] = (e / denom).astype(o_ref.dtype)


def softmax_wrapper(x, w, b, *, row_tile=256):
    """softmax(x @ w.T + b, -1). x: (..., H_in), w: (H_out, H_in), b: (H_out,)."""
    orig_shape = x.shape
    h_in = orig_shape[-1]
    h_out = w.shape[0]
    rows = 1
    for d in orig_shape[:-1]:
        rows *= d

    # Lane-dense padding: 128 on the lane (feature) axes, sublane-aligned rows.
    h_in_p = _round_up(h_in, 128)
    h_out_p = _round_up(h_out, 128)
    rows_al = _round_up(rows, 16)
    if rows_al <= row_tile:
        tr = rows_al
        rows_p = rows_al
    else:
        tr = row_tile
        rows_p = _round_up(rows, row_tile)

    x2 = x.reshape(rows, h_in)
    x_p = jnp.zeros((rows_p, h_in_p), dtype=x.dtype).at[:rows, :h_in].set(x2)

    # Hoist the transpose out of the kernel: W stored as (H_in, H_out).
    w_t = (
        jnp.zeros((h_in_p, h_out_p), dtype=x.dtype)
        .at[:h_in, :h_out]
        .set(w.astype(x.dtype).T)
    )

    # Padded logit columns get a huge negative bias -> exp underflows to 0,
    # so the softmax over the padded lane width equals the unpadded softmax.
    b_p = (
        jnp.full((1, h_out_p), -1e30, dtype=jnp.float32)
        .at[:, :h_out]
        .set(b.astype(jnp.float32))
    )

    itemsize = jnp.dtype(x.dtype).itemsize
    cost = pl.CostEstimate(
        flops=2 * rows_p * h_in_p * h_out_p,
        transcendentals=rows_p * h_out_p,
        bytes_accessed=(x_p.size + w_t.size) * itemsize
        + b_p.size * 4
        + rows_p * h_out_p * itemsize,
    )

    # VMEM budget: resident W + bias + double-buffered x/out tiles, with headroom.
    vmem_bytes = (
        w_t.size * itemsize
        + b_p.size * 4
        + 2 * (tr * h_in_p * itemsize + tr * h_out_p * itemsize)
    )
    vmem_limit = int(min(max(2 * vmem_bytes, 16 * 1024 * 1024), 64 * 1024 * 1024))

    # TODO(synk): for very large hidden (>= ~2900 f32 on v7x) add a K grid axis
    # with a VMEM logits accumulator (zero at k==0, bias+softmax at k==last).

    out = pl.pallas_call(
        _linear_softmax_kernel,
        out_shape=jax.ShapeDtypeStruct((rows_p, h_out_p), x.dtype),
        grid_spec=pltpu.PrefetchScalarGridSpec(
            num_scalar_prefetch=0,
            grid=(rows_p // tr,),
            in_specs=[
                pl.BlockSpec((tr, h_in_p), lambda i: (i, 0)),       # x: row-tiled
                pl.BlockSpec((h_in_p, h_out_p), lambda i: (0, 0)),  # W: resident
                pl.BlockSpec((1, h_out_p), lambda i: (0, 0)),       # b: resident
            ],
            out_specs=pl.BlockSpec((tr, h_out_p), lambda i: (i, 0)),
        ),
        compiler_params=pltpu.CompilerParams(
            dimension_semantics=("parallel",),
            vmem_limit_bytes=vmem_limit,
        ),
        cost_estimate=cost,
    )(x_p, w_t, b_p)

    out = out[:rows, :h_out]
    return out.reshape(orig_shape[:-1] + (h_out,))


if __name__ == "__main__":
    key = jax.random.PRNGKey(0)
    kx, kw, kb = jax.random.split(key, 3)

    batch, seq, hidden = 2, 8, 32
    x = jax.random.normal(kx, (batch, seq, hidden), dtype=jnp.float32)
    # PyTorch nn.Linear stores W as (out_features, in_features).
    w = jax.random.normal(kw, (hidden, hidden), dtype=jnp.float32) * 0.1
    b = jax.random.normal(kb, (hidden,), dtype=jnp.float32) * 0.1

    out = jax.block_until_ready(softmax_wrapper(x, w, b))

    # Pure-JAX reference check.
    ref = jax.nn.softmax(jnp.einsum("bsh,oh->bso", x, w) + b, axis=-1)
    assert out.shape == (batch, seq, hidden)
    assert jnp.allclose(out, ref, atol=1e-5, rtol=1e-5)
    assert jnp.allclose(jnp.sum(out, axis=-1), 1.0, atol=1e-5)

    print("KERNEL_OK")
</pallas_src>

<mosaic_0001>
module attributes {stable_mosaic.version = 11 : i64} {
  func.func @_linear_softmax_kernel(%arg0: i32, %arg1: memref<16x128xf32, #tpu.memory_space<vmem>>, %arg2: memref<128x128xf32, #tpu.memory_space<vmem>>, %arg3: memref<1x128xf32, #tpu.memory_space<vmem>>, %arg4: memref<16x128xf32, #tpu.memory_space<vmem>>) attributes {dimension_semantics = [#tpu.dimension_semantics<parallel>], iteration_bounds = array<i64: 1>, scalar_prefetch = 0 : i64, scratch_operands = 0 : i64, tpu.core_type = #tpu.core_type<tc>, window_params = [{transform_indices = @transform_0, window_bounds = array<i64: 16, 128>}, {pipeline_mode = #tpu.pipeline_mode<synchronous>, transform_indices = @transform_1, window_bounds = array<i64: 128, 128>}, {pipeline_mode = #tpu.pipeline_mode<synchronous>, transform_indices = @transform_2, window_bounds = array<i64: 1, 128>}, {transform_indices = @transform_3, window_bounds = array<i64: 16, 128>}]} {
    %c0 = arith.constant 0 : index
    %c0_0 = arith.constant 0 : index
    %0 = vector.load %arg1[%c0, %c0_0] : memref<16x128xf32, #tpu.memory_space<vmem>>, vector<16x128xf32>
    %c0_1 = arith.constant 0 : index
    %c0_2 = arith.constant 0 : index
    %1 = vector.load %arg2[%c0_1, %c0_2] : memref<128x128xf32, #tpu.memory_space<vmem>>, vector<128x128xf32>
    %cst = arith.constant dense<0.000000e+00> : vector<16x128xf32>
    %2 = tpu.matmul %0, %1, %cst {dimension_numbers = #tpu.dot_dimension_numbers<[1], [0], [0], [1], [0, 0, 1, 1], [], []>} : vector<16x128xf32>, vector<128x128xf32>, vector<16x128xf32> -> vector<16x128xf32>
    %c0_3 = arith.constant 0 : index
    %c0_4 = arith.constant 0 : index
    %3 = vector.load %arg3[%c0_3, %c0_4] : memref<1x128xf32, #tpu.memory_space<vmem>>, vector<1x128xf32>
    %4 = vector.broadcast %3 : vector<1x128xf32> to vector<16x128xf32>
    %5 = arith.addf %2, %4 : vector<16x128xf32>
    %cst_5 = arith.constant dense<0xFF800000> : vector<16xf32>
    %6 = vector.multi_reduction <maximumf>, %5, %cst_5 [1] : vector<16x128xf32> to vector<16xf32>
    %7 = vector.shape_cast %6 : vector<16xf32> to vector<16x1xf32>
    %8 = vector.broadcast %7 : vector<16x1xf32> to vector<16x128xf32>
    %9 = arith.subf %5, %8 : vector<16x128xf32>
    %10 = math.exp %9 : vector<16x128xf32>
    %cst_6 = arith.constant dense<0.000000e+00> : vector<16xf32>
    %11 = vector.multi_reduction <add>, %10, %cst_6 [1] : vector<16x128xf32> to vector<16xf32>
    %12 = vector.shape_cast %11 : vector<16xf32> to vector<16x1xf32>
    %13 = vector.broadcast %12 : vector<16x1xf32> to vector<16x128xf32>
    %14 = arith.divf %10, %13 : vector<16x128xf32>
    %c0_7 = arith.constant 0 : index
    %c0_8 = arith.constant 0 : index
    %15 = vector.load %arg4[%c0_7, %c0_8] : memref<16x128xf32, #tpu.memory_space<vmem>>, vector<16x128xf32>
    tpu.vector_store %arg4[%c0_7, %c0_8], %14 {strides = array<i32>} : memref<16x128xf32, #tpu.memory_space<vmem>>, vector<16x128xf32>,
    return
  }
  func.func @transform_0(%arg0: i32) -> (i32, i32) {
    %c0_i32 = arith.constant 0 : i32
    %c0_i32_0 = arith.constant 0 : i32
    return %arg0, %c0_i32 : i32, i32
  }
  func.func @transform_1(%arg0: i32) -> (i32, i32) {
    %c0_i32 = arith.constant 0 : i32
    %c0_i32_0 = arith.constant 0 : i32
    %c0_i32_1 = arith.constant 0 : i32
    return %c0_i32, %c0_i32_0 : i32, i32
  }
  func.func @transform_2(%arg0: i32) -> (i32, i32) {
    %c0_i32 = arith.constant 0 : i32
    %c0_i32_0 = arith.constant 0 : i32
    %c0_i32_1 = arith.constant 0 : i32
    return %c0_i32, %c0_i32_0 : i32, i32
  }
  func.func @transform_3(%arg0: i32) -> (i32, i32) {
    %c0_i32 = arith.constant 0 : i32
    %c0_i32_0 = arith.constant 0 : i32
    return %arg0, %c0_i32 : i32, i32
  }
}

</mosaic_0001>

<llo_original>
// kernel: tpu_custom_call.1
$region0: #{tpu_custom_call.1}
  #allocation0 [shape = 'u32[]', space=smem, size = 0x4, offset = 0x4, fixed_abs, tag = 'smem constant byte address 0x4 - core index']
  #allocation1 [shape = 'u32[144,128]{1,0:T(1,128)}', space=vmem, size = 0x12000, scoped, tag = 'internal scratch']
  %s0 = inlined_call_operand.hbm [shape: f32[16,128], index: 0, kind: input, shape index: {}]
  %s1 = inlined_call_operand.hbm [shape: f32[128,128], index: 1, kind: input, shape index: {}]
  %s2 = inlined_call_operand.vmem [shape: f32[1,128], index: 2, kind: input, shape index: {}]
  %s3 = inlined_call_operand.hbm [shape: f32[16,128], index: 3, kind: output, shape index: {}]
  %s4 = sld [smem:[#allocation0]]
  $region30: #{tpu_custom_call.1} parent=0
    _
  %s6 = ssub.s32 1, %s4
  %s7 = scalar_select 0, %s6, %s4
  $region1: #{tpu_custom_call.1} parent=0
    #allocation2 [shape = 'u8[8192]{0}', space=vmem, size = 0x2000, scoped, tag = 'input window, operand 0, single buffered']
    #allocation3 [shape = 's32[1]{0}', space=sflag, size = 0x4, scoped, tag = 'scoped memory for tpu_custom_call.1']
    #allocation4 [shape = 's32[1]{0}', space=sflag, size = 0x4, scoped, tag = 'scoped memory for tpu_custom_call.1']
    #allocation5 [shape = 'u8[65536]{0}', space=vmem, size = 0x10000, scoped, tag = 'input window, operand 1, single buffered']
    #allocation6 [shape = 's32[1]{0}', space=sflag, size = 0x4, scoped, tag = 'scoped memory for tpu_custom_call.1']
    #allocation7 [shape = 'u8[8192]{0}', space=vmem, size = 0x2000, scoped, tag = 'output window, operand 0, single buffered']
    %8 = vsyncpa [#allocation3], 0
    %9 = vsyncpa [#allocation6], 0
    %10 = vsyncpa [#allocation4], 0
    // Predicated region
    $region2: #{tpu_custom_call.1} parent=1 // pred_check
      _
    $region3: #{tpu_custom_call.1} parent=1 // pred_check_branch
      %12 = sbr.rel (0) target = $region5
    $region4: #{tpu_custom_call.1} parent=1 // pred_region
      %s14 = ssub.s32 256, 256
      %15 = vsyncadd [#allocation3], %s14
      %s16 = sshll.u32 [#allocation2], 4
      %s17 = int_to_ptr.vmem [resolvable:$true] %s16
      %22 = dma.hbm_to_vmem [thread:$0]  %s0, 256, %s17, [#allocation3], 128, 128, 8
    $region5: #{tpu_custom_call.1} parent=1 // pred_fallthru
      _
    // Predicated region
    $region6: #{tpu_custom_call.1} parent=1 // pred_check
      _
    $region7: #{tpu_custom_call.1} parent=1 // pred_check_branch
      %24 = sbr.rel (0) target = $region9
    $region8: #{tpu_custom_call.1} parent=1 // pred_region
      %s26 = ssub.s32 2048, 2048
      %27 = vsyncadd [#allocation6], %s26
      %s28 = sshll.u32 [#allocation5], 4
      %s29 = int_to_ptr.vmem [resolvable:$true] %s28
      %34 = dma.hbm_to_vmem [thread:$0]  %s1, 2048, %s29, [#allocation6], 128, 128, 8
    $region9: #{tpu_custom_call.1} parent=1 // pred_fallthru
      _
    // Predicated region
    $region10: #{tpu_custom_call.1} parent=1 // pred_check
      _
    $region11: #{tpu_custom_call.1} parent=1 // pred_check_branch
      %36 = sbr.rel (0) target = $region13
    $region12: #{tpu_custom_call.1} parent=1 // pred_region
      _
    $region13: #{tpu_custom_call.1} parent=1 // pred_fallthru
      _
    // Predicated region
    $region14: #{tpu_custom_call.1} parent=1 // pred_check
      _
    $region15: #{tpu_custom_call.1} parent=1 // pred_check_branch
      %38 = sbr.rel (0) target = $region17
    $region16: #{tpu_custom_call.1} parent=1 // pred_region
      %39 = dma.done [#allocation3], 256
    $region17: #{tpu_custom_call.1} parent=1 // pred_fallthru
      _
    // Predicated region
    $region18: #{tpu_custom_call.1} parent=1 // pred_check
      _
    $region19: #{tpu_custom_call.1} parent=1 // pred_check_branch
      %41 = sbr.rel (0) target = $region21
    $region20: #{tpu_custom_call.1} parent=1 // pred_region
      %42 = dma.done [#allocation6], 2048
    $region21: #{tpu_custom_call.1} parent=1 // pred_fallthru
      _
    %v43 = vld [vmem:[#allocation2] sm:$0xff]
    %v44 = vld [vmem:[#allocation2 + $0x8] sm:$0xff]
    %v45 = vld [vmem:[#allocation5] sm:$0xff]
    %v46 = vld [vmem:[#allocation5 + $0x8] sm:$0xff]
    %v47 = vld [vmem:[#allocation5 + $0x10] sm:$0xff]
    %v48 = vld [vmem:[#allocation5 + $0x18] sm:$0xff]
    %v49 = vld [vmem:[#allocation5 + $0x20] sm:$0xff]
    %v50 = vld [vmem:[#allocation5 + $0x28] sm:$0xff]
    %v51 = vld [vmem:[#allocation5 + $0x30] sm:$0xff]
    %v52 = vld [vmem:[#allocation5 + $0x38] sm:$0xff]
    %v53 = vld [vmem:[#allocation5 + $0x40] sm:$0xff]
    %v54 = vld [vmem:[#allocation5 + $0x48] sm:$0xff]
    %v55 = vld [vmem:[#allocation5 + $0x50] sm:$0xff]
    %v56 = vld [vmem:[#allocation5 + $0x58] sm:$0xff]
    %v57 = vld [vmem:[#allocation5 + $0x60] sm:$0xff]
    %v58 = vld [vmem:[#allocation5 + $0x68] sm:$0xff]
    %v59 = vld [vmem:[#allocation5 + $0x70] sm:$0xff]
    %v60 = vld [vmem:[#allocation5 + $0x78] sm:$0xff]
    %v61 = vld [vmem:[%s2] sm:$0x1]
    %v63 = vlaneseq
    %v64 = vshrl.u32 %v63, 7
    %v65 = vsub.s32 0, %v64
    %v66 = vrot.slane %v61, %v65
    %68 = vmatprep.subr.mxu0 0.0
    %69 = vmatpush1.msra.mxu0 %v45
    %70 = vmatprep.subr.mxu0 0.0
    %71 = vmatpush1.msra.mxu0 %v46
    %72 = vmatprep.subr.mxu0 0.0
    %73 = vmatpush1.msra.mxu0 %v47
    %74 = vmatprep.subr.mxu0 0.0
    %75 = vmatpush1.msra.mxu0 %v48
    %76 = vmatprep.subr.mxu0 0.0
    %77 = vmatpush1.msra.mxu0 %v49
    %78 = vmatprep.subr.mxu0 0.0
    %79 = vmatpush1.msra.mxu0 %v50
    %80 = vmatprep.subr.mxu0 0.0
    %81 = vmatpush1.msra.mxu0 %v51
    %82 = vmatprep.subr.mxu0 0.0
    %83 = vmatpush1.msra.mxu0 %v52
    %84 = vmatprep.subr.mxu0 0.0
    %85 = vmatpush1.msra.mxu0 %v53
    %86 = vmatprep.subr.mxu0 0.0
    %87 = vmatpush1.msra.mxu0 %v54
    %88 = vmatprep.subr.mxu0 0.0
    %89 = vmatpush1.msra.mxu0 %v55
    %90 = vmatprep.subr.mxu0 0.0
    %91 = vmatpush1.msra.mxu0 %v56
    %92 = vmatprep.subr.mxu0 0.0
    %93 = vmatpush1.msra.mxu0 %v57
    %94 = vmatprep.subr.mxu0 0.0
    %95 = vmatpush1.msra.mxu0 %v58
    %96 = vmatprep.subr.mxu0 0.0
    %97 = vmatpush1.msra.mxu0 %v59
    %98 = vmatprep.subr.mxu0 0.0
    %99 = vmatpush1.msra.mxu0 %v60
    %100 = vmatprep.subr.mxu0 0.0
    %101 = vmatpush1.msra.mxu0 0.0
    %102 = vmatprep.subr.mxu0 0.0
    %103 = vmatpush1.msra.mxu0 0.0
    %104 = vmatprep.subr.mxu0 0.0
    %105 = vmatpush1.msra.mxu0 0.0
    %106 = vmatprep.subr.mxu0 0.0
    %107 = vmatpush1.msra.mxu0 0.0
    %108 = vmatprep.subr.mxu0 0.0
    %109 = vmatpush1.msra.mxu0 0.0
    %110 = vmatprep.subr.mxu0 0.0
    %111 = vmatpush1.msra.mxu0 0.0
    %112 = vmatprep.subr.mxu0 0.0
    %113 = vmatpush1.msra.mxu0 0.0
    %114 = vmatprep.subr.mxu0 0.0
    %115 = vmatpush1.msra.mxu0 0.0
    %116 = vmatprep.subr.mxu0 0.0
    %117 = vmatpush1.msra.mxu0 0.0
    %118 = vmatprep.subr.mxu0 0.0
    %119 = vmatpush1.msra.mxu0 0.0
    %120 = vmatprep.subr.mxu0 0.0
    %121 = vmatpush1.msra.mxu0 0.0
    %122 = vmatprep.subr.mxu0 0.0
    %123 = vmatpush1.msra.mxu0 0.0
    %124 = vmatprep.subr.mxu0 0.0
    %125 = vmatpush1.msra.mxu0 0.0
    %126 = vmatprep.subr.mxu0 0.0
    %127 = vmatpush1.msra.mxu0 0.0
    %128 = vmatprep.subr.mxu0 0.0
    %129 = vmatpush1.msra.mxu0 0.0
    %130 = vmatprep.subr.mxu0 0.0
    %131 = vmatpush1.msra.mxu0 0.0
    %132 = vmatprep.mubr.f32.mxu0 0.0
    %133 = vmatmul.mubr.f32.gmra.mrb[0].mxu0 %v43
    %v134 = vpop.f32.mrb[0].mxu0
    %v135 = vadd.f32 %v66, %v134
    %v136 = vpop.f32.mrb[0].mxu0
    %137 = vmatprep.mubr.f32.mxu0 0.0
    %138 = vmatmul.mubr.f32.gmra.mrb[0].mxu0 %v44
    %v139 = vpop.f32.mrb[0].mxu0
    %v140 = vadd.f32 %v66, %v139
    %v141 = vpop.f32.mrb[0].mxu0
    %142 = vdwg.mxu0
    %143 = vmax.xlane.f32.xlu0 %v135
    %v144 = vpop.xlane.xlu0 %143
    %145 = vmax.xlane.f32.xlu0 %v140
    %v146 = vpop.xlane.xlu0 %145
    %v147 = vsub.f32 %v135, %v144
    %v148 = vsub.f32 %v140, %v146
    %v149 = vmul.f32 %v147, 1.442695
    %v150 = vpow.pop %v149
    %v151 = vmul.f32 %v148, 1.442695
    %v152 = vpow.pop %v151
    %153 = vadd.xlane.f32.xlu0 %v150
    %v154 = vpop.xlane.xlu0 %153
    %155 = vadd.xlane.f32.xlu0 %v152
    %v156 = vpop.xlane.xlu0 %155
    %v157 = vrcp.pop %v154
    %v158 = vmul.f32 %v150, %v157
    %v159 = vrcp.pop %v156
    %v160 = vmul.f32 %v152, %v159
    %161 = vst [vmem:[#allocation7] sm:$0xff] %v158
    %162 = vst [vmem:[#allocation7 + $0x8] sm:$0xff] %v160
    // Predicated region
    $region22: #{tpu_custom_call.1} parent=1 // pred_check
      _
    $region23: #{tpu_custom_call.1} parent=1 // pred_check_branch
      %164 = sbr.rel (0) target = $region25
    $region24: #{tpu_custom_call.1} parent=1 // pred_region
      %s166 = ssub.s32 256, 256
      %167 = vsyncadd [#allocation4], %s166
      %s168 = sshll.u32 [#allocation7], 4
      %s169 = int_to_ptr.vmem [resolvable:$true] %s168
      %174 = dma.vmem_to_hbm [thread:$0]  %s169, 256, %s3, [#allocation4], 128, 128, 8
    $region25: #{tpu_custom_call.1} parent=1 // pred_fallthru
      _
    // Predicated region
    $region26: #{tpu_custom_call.1} parent=1 // pred_check
      _
    $region27: #{tpu_custom_call.1} parent=1 // pred_check_branch
      %176 = sbr.rel (0) target = $region29
    $region28: #{tpu_custom_call.1} parent=1 // pred_region
      %177 = dma.done [#allocation4], 256
    $region29: #{tpu_custom_call.1} parent=1 // pred_fallthru
      _
    %178 = vsyncpa [#allocation3], 1
    %179 = vsyncpa [#allocation6], 1
    %180 = vsyncpa [#allocation4], 1

</llo_original>
